<compile_context>
chip_gen: v6e
topology: v6e:2x2x1
jax: 0.10.0
libtpu: 0.0.40
codegen_flags: <defaults>
</compile_context>

<pallas_src>
import functools

import jax
import jax.numpy as jnp
import numpy as np
from jax.experimental import pallas as pl
from jax.experimental.pallas import tpu as pltpu


def malconv_kernel(x_ref, w_ref, b_ref, fw1_ref, fb1_ref, fw2_ref, fb2_ref,
                   out_ref, acc_ref, *, num_windows, tile_w, tb, mask_tail):
    """Grid = (batch_blocks, window_tiles); window axis is the reduction."""
    w_step = pl.program_id(1)

    # --- init running max at the first window tile of this batch block ------
    @pl.when(w_step == 0)
    def _():
        acc_ref[...] = jnp.full((tb, 128), -jnp.inf, jnp.float32)

    # --- fused conv_1 / conv_2 as a single bf16 MXU matmul (f32 acc) --------
    # x block: (tb, tile_w, WIN*8) f32 in VMEM -> fold batch into M, cast bf16.
    x = x_ref[...].reshape(tb * tile_w, -1).astype(jnp.bfloat16)
    z = jnp.dot(x, w_ref[...], preferred_element_type=jnp.float32) + b_ref[...]
    gated = z[:, :128] * jax.nn.sigmoid(z[:, 128:])      # (tb*tile_w, 128) f32
    g3 = gated.reshape(tb, tile_w, 128)

    # --- mask window rows past NW (only emitted when a partial tile exists) -
    if mask_tail:
        widx = jax.lax.broadcasted_iota(jnp.int32, (1, tile_w, 1), 1)
        valid = (w_step * tile_w + widx) < num_windows
        g3 = jnp.where(valid, g3, -jnp.inf)

    # --- running global max pool over window positions ----------------------
    acc_ref[...] = jnp.maximum(acc_ref[...], jnp.max(g3, axis=1))

    # --- epilogue: fc_1 then fc_2 (padded to 128 lanes), last tile only -----
    @pl.when(w_step == pl.num_programs(1) - 1)
    def _():
        h = jnp.dot(acc_ref[...], fw1_ref[...],
                    preferred_element_type=jnp.float32) + fb1_ref[...]
        out_ref[...] = jnp.dot(h, fw2_ref[...],
                               preferred_element_type=jnp.float32) + fb2_ref[...]


def _round_up(v, m):
    return ((v + m - 1) // m) * m


def malconv_forward(x, params, window_size):
    """x: (B, L, 8) float32 (frozen-embedding output). Returns (B, 2) logits."""
    B, L, E = x.shape
    assert E == 8
    NW = L // window_size            # Conv1d(kernel=stride=WIN) floors; drop tail
    if NW == 0:
        raise ValueError("input length shorter than window_size")
    CWF = window_size * 8            # flattened (time, channel) window

    # Free reshape: (B, L, 8) row-major == (B, NW, WIN*8) row-major.
    # (If L % WIN != 0 the slice materializes a copy; unavoidable without
    #  padding on the producer side.)
    if L % window_size != 0:
        x = x[:, :NW * window_size, :]
    xr = x.reshape(B, NW, CWF)       # stays f32; cast to bf16 in-kernel

    # Combined conv weight: w_comb[k*8 + c, o] with
    #   c in 0..3 -> conv_1 (cols 0..127), c in 4..7 -> conv_2 (cols 128..255)
    w1 = jnp.transpose(params["conv1_w"], (2, 1, 0))    # (WIN, 4, 128)
    w2 = jnp.transpose(params["conv2_w"], (2, 1, 0))    # (WIN, 4, 128)
    zeros = jnp.zeros_like(w1)
    top = jnp.concatenate([w1, zeros], axis=-1)         # channels 0..3
    bot = jnp.concatenate([zeros, w2], axis=-1)         # channels 4..7
    w_comb = jnp.concatenate([top, bot], axis=1).reshape(CWF, 256)
    w_comb = w_comb.astype(jnp.bfloat16)
    b_comb = jnp.concatenate([params["conv1_b"],
                              params["conv2_b"]]).reshape(1, 256)

    fw1 = params["fc1_w"].T                             # (128, 128)
    fb1 = params["fc1_b"].reshape(1, 128)
    fw2p = jnp.zeros((128, 128), jnp.float32).at[:, :2].set(params["fc2_w"].T)
    fb2p = jnp.zeros((1, 128), jnp.float32).at[:, :2].set(params["fc2_b"])

    # ---------------- generation-aware tile / VMEM plan ---------------------
    try:
        vmem_cap = int(pltpu.get_tpu_info().vmem_capacity_bytes)
    except Exception:                 # pragma: no cover - conservative fallback
        vmem_cap = 64 << 20           # v7x-sized assumption is safe everywhere
    vmem_budget = max(vmem_cap - (24 << 20), 24 << 20)

    # Batch blocking: fold TB batch rows into the matmul M dim; keep >= 2
    # batch blocks when possible so both v7x TensorCores get work.
    tb = 1
    for cand in (8, 4, 2):
        if B % cand == 0 and B // cand >= 2:
            tb = cand
            break

    # Window tile: multiple of 16 (layout-free batch fold / sublane packing);
    # bigger cap only where VMEM allows (v5e/v6e), never blindly on v7x.
    tile_w_cap = 1024 if vmem_budget >= (80 << 20) else 512
    tile_w = min(_round_up(NW, 16), tile_w_cap)

    def plan_vmem(tb_, tw_):
        x_blk = tb_ * tw_ * CWF * 4                       # f32 input block
        temps = tb_ * tw_ * (CWF * 2 + 256 * 4 * 2 + 128 * 4)  # bf16 cast + z
        w_blk = CWF * 256 * 2
        small = (256 + 2 * 128 * 128 + 2 * 128 + tb_ * 128) * 4
        return 2 * x_blk + temps + 2 * w_blk + 2 * small + (2 << 20)

    while plan_vmem(tb, tile_w) > vmem_budget:
        if tile_w > 16:
            tile_w = _round_up(tile_w // 2, 16)
        elif tb > 1:
            tb //= 2
        else:
            break

    nb = B // tb
    n_wt = pl.cdiv(NW, tile_w)
    mask_tail = (NW % tile_w) != 0

    cost = pl.CostEstimate(
        flops=int(2 * B * NW * CWF * 256 + 2 * B * 2 * 128 * 128),
        transcendentals=int(B * NW * 128),
        bytes_accessed=int(B * NW * CWF * 4 + CWF * 256 * 2
                           + 2 * 128 * 128 * 4 + B * 128 * 4),
    )

    kernel = functools.partial(malconv_kernel, num_windows=NW, tile_w=tile_w,
                               tb=tb, mask_tail=mask_tail)
    out = pl.pallas_call(
        kernel,
        out_shape=jax.ShapeDtypeStruct((nb, tb, 128), jnp.float32),
        grid_spec=pltpu.PrefetchScalarGridSpec(
            num_scalar_prefetch=0,
            grid=(nb, n_wt),
            in_specs=[
                pl.BlockSpec((tb, tile_w, CWF), lambda b, w: (b, w, 0)),  # x
                pl.BlockSpec((CWF, 256), lambda b, w: (0, 0)),   # combined conv W
                pl.BlockSpec((1, 256), lambda b, w: (0, 0)),     # combined conv b
                pl.BlockSpec((128, 128), lambda b, w: (0, 0)),   # fc1 W
                pl.BlockSpec((1, 128), lambda b, w: (0, 0)),     # fc1 b
                pl.BlockSpec((128, 128), lambda b, w: (0, 0)),   # fc2 W (padded)
                pl.BlockSpec((1, 128), lambda b, w: (0, 0)),     # fc2 b (padded)
            ],
            out_specs=pl.BlockSpec((None, tb, 128), lambda b, w: (b, 0, 0)),
            scratch_shapes=[pltpu.VMEM((tb, 128), jnp.float32)],  # running max
        ),
        compiler_params=pltpu.CompilerParams(
            dimension_semantics=("parallel", "arbitrary"),
            vmem_limit_bytes=int(vmem_budget)),
        cost_estimate=cost,
    )(xr, w_comb, b_comb, fw1, fb1, fw2p, fb2p)

    return out.reshape(B, 128)[:, :2]


def init_params(key, window_size):
    ks = jax.random.split(key, 8)
    s = 0.05
    return dict(
        conv1_w=jax.random.normal(ks[0], (128, 4, window_size), jnp.float32) * s,
        conv1_b=jax.random.normal(ks[1], (128,), jnp.float32) * s,
        conv2_w=jax.random.normal(ks[2], (128, 4, window_size), jnp.float32) * s,
        conv2_b=jax.random.normal(ks[3], (128,), jnp.float32) * s,
        fc1_w=jax.random.normal(ks[4], (128, 128), jnp.float32) * s,
        fc1_b=jax.random.normal(ks[5], (128,), jnp.float32) * s,
        fc2_w=jax.random.normal(ks[6], (2, 128), jnp.float32) * s,
        fc2_b=jax.random.normal(ks[7], (2,), jnp.float32) * s,
    )


def reference_forward(x, params, window_size):
    """Pure-JAX f32 reference mirroring the PyTorch module (uses lax conv)."""
    xt = jnp.transpose(x, (0, 2, 1))                    # (B, 8, L)

    def conv(a, w, b):
        y = jax.lax.conv_general_dilated(
            a, w, window_strides=(window_size,), padding="VALID",
            dimension_numbers=("NCH", "OIH", "NCH"))
        return y + b[None, :, None]

    cnn = conv(xt[:, 0:4, :], params["conv1_w"], params["conv1_b"])
    gate = jax.nn.sigmoid(conv(xt[:, 4:8, :], params["conv2_w"], params["conv2_b"]))
    g = cnn * gate                                      # (B, 128, NW)
    pooled = jnp.max(g, axis=-1)                        # MaxPool1d(NW) -> (B, 128)
    h = pooled @ params["fc1_w"].T + params["fc1_b"]
    return h @ params["fc2_w"].T + params["fc2_b"]      # (B, 2)


if __name__ == "__main__":
    # Small stand-ins for max_input_size=102400, window_size=500.
    max_input_size, window_size = 1024, 64
    B = 2

    key = jax.random.PRNGKey(0)
    kp, kx = jax.random.split(key)
    params = init_params(kp, window_size)
    # x is the frozen-embedding output: (B, L, 8) float32
    x = jax.random.normal(kx, (B, max_input_size, 8), jnp.float32)

    fwd = jax.jit(functools.partial(malconv_forward, window_size=window_size))
    out = jax.block_until_ready(fwd(x, params))
    ref = reference_forward(x, params, window_size)

    assert out.shape == (B, 2)
    # bf16 matmul operands (f32 accumulation) -> relaxed tolerance vs f32 ref.
    np.testing.assert_allclose(np.asarray(out), np.asarray(ref),
                               rtol=2e-2, atol=2e-2)
    print("KERNEL_OK")
</pallas_src>

<mosaic_0001>
module attributes {stable_mosaic.version = 11 : i64} {
  func.func @malconv_kernel(%arg0: i32, %arg1: i32, %arg2: memref<1x16x512xf32, #tpu.memory_space<vmem>>, %arg3: memref<512x256xbf16, #tpu.memory_space<vmem>>, %arg4: memref<1x256xf32, #tpu.memory_space<vmem>>, %arg5: memref<128x128xf32, #tpu.memory_space<vmem>>, %arg6: memref<1x128xf32, #tpu.memory_space<vmem>>, %arg7: memref<128x128xf32, #tpu.memory_space<vmem>>, %arg8: memref<1x128xf32, #tpu.memory_space<vmem>>, %arg9: memref<1x1x128xf32, #tpu.memory_space<vmem>>, %arg10: memref<1x128xf32, #tpu.memory_space<vmem>>) attributes {dimension_semantics = [#tpu.dimension_semantics<parallel>, #tpu.dimension_semantics<arbitrary>], iteration_bounds = array<i64: 2, 1>, scalar_prefetch = 0 : i64, scratch_operands = 1 : i64, tpu.core_type = #tpu.core_type<tc>, window_params = [{transform_indices = @transform_0, window_bounds = array<i64: 1, 16, 512>}, {pipeline_mode = #tpu.pipeline_mode<synchronous>, transform_indices = @transform_1, window_bounds = array<i64: 512, 256>}, {pipeline_mode = #tpu.pipeline_mode<synchronous>, transform_indices = @transform_2, window_bounds = array<i64: 1, 256>}, {pipeline_mode = #tpu.pipeline_mode<synchronous>, transform_indices = @transform_3, window_bounds = array<i64: 128, 128>}, {pipeline_mode = #tpu.pipeline_mode<synchronous>, transform_indices = @transform_4, window_bounds = array<i64: 1, 128>}, {pipeline_mode = #tpu.pipeline_mode<synchronous>, transform_indices = @transform_5, window_bounds = array<i64: 128, 128>}, {pipeline_mode = #tpu.pipeline_mode<synchronous>, transform_indices = @transform_6, window_bounds = array<i64: 1, 128>}, {transform_indices = @transform_7, window_bounds = array<i64: 1, 1, 128>}]} {
    %c0_i32 = arith.constant 0 : i32
    %0 = arith.cmpi eq, %arg1, %c0_i32 : i32
    %1 = arith.extui %0 : i1 to i32
    %c0_i32_0 = arith.constant 0 : i32
    %2 = arith.cmpi ne, %1, %c0_i32_0 : i32
    scf.if %2 {
      %cst_15 = arith.constant 0xFF800000 : f32
      %27 = vector.broadcast %cst_15 : f32 to vector<1x128xf32>
      %c0_16 = arith.constant 0 : index
      %c0_17 = arith.constant 0 : index
      %28 = vector.load %arg10[%c0_16, %c0_17] : memref<1x128xf32, #tpu.memory_space<vmem>>, vector<1x128xf32>
      tpu.vector_store %arg10[%c0_16, %c0_17], %27 {strides = array<i32>} : memref<1x128xf32, #tpu.memory_space<vmem>>, vector<1x128xf32>,
    } else {
    }
    %c0 = arith.constant 0 : index
    %c0_1 = arith.constant 0 : index
    %c0_2 = arith.constant 0 : index
    %3 = vector.load %arg2[%c0, %c0_1, %c0_2] : memref<1x16x512xf32, #tpu.memory_space<vmem>>, vector<1x16x512xf32>
    %4 = vector.shape_cast %3 : vector<1x16x512xf32> to vector<16x512xf32>
    %5 = arith.truncf %4 : vector<16x512xf32> to vector<16x512xbf16>
    %c0_3 = arith.constant 0 : index
    %c0_4 = arith.constant 0 : index
    %6 = vector.load %arg3[%c0_3, %c0_4] : memref<512x256xbf16, #tpu.memory_space<vmem>>, vector<512x256xbf16>
    %cst = arith.constant dense<0.000000e+00> : vector<16x256xf32>
    %7 = tpu.matmul %5, %6, %cst {dimension_numbers = #tpu.dot_dimension_numbers<[1], [0], [0], [1], [0, 0, 1, 1], [], []>} : vector<16x512xbf16>, vector<512x256xbf16>, vector<16x256xf32> -> vector<16x256xf32>
    %c0_5 = arith.constant 0 : index
    %c0_6 = arith.constant 0 : index
    %8 = vector.load %arg4[%c0_5, %c0_6] : memref<1x256xf32, #tpu.memory_space<vmem>>, vector<1x256xf32>
    %9 = vector.broadcast %8 : vector<1x256xf32> to vector<16x256xf32>
    %10 = arith.addf %7, %9 : vector<16x256xf32>
    %11 = vector.extract_strided_slice %10 {offsets = [0, 0], sizes = [16, 128], strides = [1, 1]} : vector<16x256xf32> to vector<16x128xf32>
    %12 = vector.extract_strided_slice %10 {offsets = [0, 128], sizes = [16, 128], strides = [1, 1]} : vector<16x256xf32> to vector<16x128xf32>
    %13 = arith.negf %12 : vector<16x128xf32>
    %14 = math.exp %13 : vector<16x128xf32>
    %cst_7 = arith.constant 1.000000e+00 : f32
    %15 = vector.broadcast %cst_7 : f32 to vector<16x128xf32>
    %16 = arith.addf %15, %14 : vector<16x128xf32>
    %17 = arith.divf %15, %16 : vector<16x128xf32>
    %18 = arith.mulf %11, %17 : vector<16x128xf32>
    %19 = vector.shape_cast %18 : vector<16x128xf32> to vector<1x16x128xf32>
    %c0_8 = arith.constant 0 : index
    %c0_9 = arith.constant 0 : index
    %20 = vector.load %arg10[%c0_8, %c0_9] : memref<1x128xf32, #tpu.memory_space<vmem>>, vector<1x128xf32>
    %cst_10 = arith.constant dense<0xFF800000> : vector<1x128xf32>
    %21 = vector.multi_reduction <maximumf>, %19, %cst_10 [1] : vector<1x16x128xf32> to vector<1x128xf32>
    %22 = arith.maximumf %20, %21 : vector<1x128xf32>
    %c0_11 = arith.constant 0 : index
    %c0_12 = arith.constant 0 : index
    %23 = vector.load %arg10[%c0_11, %c0_12] : memref<1x128xf32, #tpu.memory_space<vmem>>, vector<1x128xf32>
    tpu.vector_store %arg10[%c0_11, %c0_12], %22 {strides = array<i32>} : memref<1x128xf32, #tpu.memory_space<vmem>>, vector<1x128xf32>,
    %c0_i32_13 = arith.constant 0 : i32
    %24 = arith.cmpi eq, %arg1, %c0_i32_13 : i32
    %25 = arith.extui %24 : i1 to i32
    %c0_i32_14 = arith.constant 0 : i32
    %26 = arith.cmpi ne, %25, %c0_i32_14 : i32
    scf.if %26 {
      %c0_15 = arith.constant 0 : index
      %c0_16 = arith.constant 0 : index
      %27 = vector.load %arg10[%c0_15, %c0_16] : memref<1x128xf32, #tpu.memory_space<vmem>>, vector<1x128xf32>
      %c0_17 = arith.constant 0 : index
      %c0_18 = arith.constant 0 : index
      %28 = vector.load %arg5[%c0_17, %c0_18] : memref<128x128xf32, #tpu.memory_space<vmem>>, vector<128x128xf32>
      %cst_19 = arith.constant dense<0.000000e+00> : vector<1x128xf32>
      %29 = tpu.matmul %27, %28, %cst_19 {dimension_numbers = #tpu.dot_dimension_numbers<[1], [0], [0], [1], [0, 0, 1, 1], [], []>} : vector<1x128xf32>, vector<128x128xf32>, vector<1x128xf32> -> vector<1x128xf32>
      %c0_20 = arith.constant 0 : index
      %c0_21 = arith.constant 0 : index
      %30 = vector.load %arg6[%c0_20, %c0_21] : memref<1x128xf32, #tpu.memory_space<vmem>>, vector<1x128xf32>
      %31 = arith.addf %29, %30 : vector<1x128xf32>
      %c0_22 = arith.constant 0 : index
      %c0_23 = arith.constant 0 : index
      %32 = vector.load %arg7[%c0_22, %c0_23] : memref<128x128xf32, #tpu.memory_space<vmem>>, vector<128x128xf32>
      %cst_24 = arith.constant dense<0.000000e+00> : vector<1x128xf32>
      %33 = tpu.matmul %31, %32, %cst_24 {dimension_numbers = #tpu.dot_dimension_numbers<[1], [0], [0], [1], [0, 0, 1, 1], [], []>} : vector<1x128xf32>, vector<128x128xf32>, vector<1x128xf32> -> vector<1x128xf32>
      %c0_25 = arith.constant 0 : index
      %c0_26 = arith.constant 0 : index
      %34 = vector.load %arg8[%c0_25, %c0_26] : memref<1x128xf32, #tpu.memory_space<vmem>>, vector<1x128xf32>
      %35 = arith.addf %33, %34 : vector<1x128xf32>
      %c0_27 = arith.constant 0 : index
      %c0_28 = arith.constant 0 : index
      %c0_29 = arith.constant 0 : index
      %36 = vector.load %arg9[%c0_27, %c0_28, %c0_29] : memref<1x1x128xf32, #tpu.memory_space<vmem>>, vector<1x1x128xf32>
      %37 = vector.shape_cast %36 : vector<1x1x128xf32> to vector<1x128xf32>
      %38 = vector.shape_cast %35 : vector<1x128xf32> to vector<1x1x128xf32>
      tpu.vector_store %arg9[%c0_27, %c0_28, %c0_29], %38 {strides = array<i32>} : memref<1x1x128xf32, #tpu.memory_space<vmem>>, vector<1x1x128xf32>,
    } else {
    }
    return
  }
  func.func @transform_0(%arg0: i32, %arg1: i32) -> (i32, i32, i32) {
    %c0_i32 = arith.constant 0 : i32
    %c0_i32_0 = arith.constant 0 : i32
    return %arg0, %arg1, %c0_i32 : i32, i32, i32
  }
  func.func @transform_1(%arg0: i32, %arg1: i32) -> (i32, i32) {
    %c0_i32 = arith.constant 0 : i32
    %c0_i32_0 = arith.constant 0 : i32
    %c0_i32_1 = arith.constant 0 : i32
    return %c0_i32, %c0_i32_0 : i32, i32
  }
  func.func @transform_2(%arg0: i32, %arg1: i32) -> (i32, i32) {
    %c0_i32 = arith.constant 0 : i32
    %c0_i32_0 = arith.constant 0 : i32
    %c0_i32_1 = arith.constant 0 : i32
    return %c0_i32, %c0_i32_0 : i32, i32
  }
  func.func @transform_3(%arg0: i32, %arg1: i32) -> (i32, i32) {
    %c0_i32 = arith.constant 0 : i32
    %c0_i32_0 = arith.constant 0 : i32
    %c0_i32_1 = arith.constant 0 : i32
    return %c0_i32, %c0_i32_0 : i32, i32
  }
  func.func @transform_4(%arg0: i32, %arg1: i32) -> (i32, i32) {
    %c0_i32 = arith.constant 0 : i32
    %c0_i32_0 = arith.constant 0 : i32
    %c0_i32_1 = arith.constant 0 : i32
    return %c0_i32, %c0_i32_0 : i32, i32
  }
  func.func @transform_5(%arg0: i32, %arg1: i32) -> (i32, i32) {
    %c0_i32 = arith.constant 0 : i32
    %c0_i32_0 = arith.constant 0 : i32
    %c0_i32_1 = arith.constant 0 : i32
    return %c0_i32, %c0_i32_0 : i32, i32
  }
  func.func @transform_6(%arg0: i32, %arg1: i32) -> (i32, i32) {
    %c0_i32 = arith.constant 0 : i32
    %c0_i32_0 = arith.constant 0 : i32
    %c0_i32_1 = arith.constant 0 : i32
    return %c0_i32, %c0_i32_0 : i32, i32
  }
  func.func @transform_7(%arg0: i32, %arg1: i32) -> (i32, i32, i32) {
    %c0_i32 = arith.constant 0 : i32
    %c0_i32_0 = arith.constant 0 : i32
    %c0_i32_1 = arith.constant 0 : i32
    return %arg0, %c0_i32, %c0_i32_0 : i32, i32, i32
  }
}

</mosaic_0001>

<llo_original>
// kernel: malconv_forward.1
$region0: #{malconv_forward.1}
  #allocation0 [shape = 'u32[]', space=smem, size = 0x4, offset = 0x4, fixed_abs, tag = 'smem constant byte address 0x4 - core index']
  #allocation1 [shape = 'u32[144,128]{1,0:T(1,128)}', space=vmem, size = 0x12000, scoped, tag = 'internal scratch']
  #allocation2 [shape = 'f32[1,128]{1,0:T(1,128)}', space=vmem, size = 0x200, scoped, tag = 'scratch operand']
  %s0 = inlined_call_operand.vmem [shape: f32[2,16,512], index: 0, kind: input, shape index: {}]
  %s1 = inlined_call_operand.vmem [shape: bf16[512,256], index: 1, kind: input, shape index: {}]
  %s2 = inlined_call_operand.vmem [shape: f32[1,256], index: 2, kind: input, shape index: {}]
  %s3 = inlined_call_operand.vmem [shape: f32[128,128], index: 3, kind: input, shape index: {}]
  %s4 = inlined_call_operand.vmem [shape: f32[1,128], index: 4, kind: input, shape index: {}]
  %s5 = inlined_call_operand.vmem [shape: f32[128,128], index: 5, kind: input, shape index: {}]
  %s6 = inlined_call_operand.vmem [shape: f32[1,128], index: 6, kind: input, shape index: {}]
  %s7 = inlined_call_operand.hbm [shape: f32[2,1,128], index: 7, kind: output, shape index: {}]
  %s8 = sld [smem:[#allocation0]]
  $region69: #{malconv_forward.1} parent=0
    _
  %s10 = ssub.s32 1, %s8
  %s11 = scalar_select 0, %s10, %s8
  $region1: #{malconv_forward.1} parent=0
    #allocation3 [shape = 'u8[1024]{0}', space=vmem, size = 0x400, scoped, tag = 'output window, operand 0']
    #allocation4 [shape = 's32[2]{0}', space=sflag, size = 0x8, scoped, tag = 'scoped memory for malconv_forward.1']
    %12 = vsyncpa [#allocation4], 0
    %s13 = scalar_lea.sflag [#allocation4], 1
    %14 = vsyncpa %s13, 0
    loop: start=0, step=1, limit=4
    $region2: #{malconv_forward.1} parent=1 // loop_pre_header
      _
    $region3: #{malconv_forward.1} parent=1 // loop_header
      %s16 = sphi 0, %s20
      %p17 = scmp.ge.s32.totalorder %s16, 4
      %s23 = sphi 0, %s35
      %s24 = sphi 0, %s31
      %s25 = sphi 0, %s23
      %s26 = sphi 0, %s24
      %s27 = sphi 0, %s25
      %s28 = sphi 0, %s26
      %s40 = sphi 0, %s42
      %s43 = sphi 0, %s40
      %s44 = sphi 0, %s43
      %s60 = sphi 0, %s44
      %s64 = sphi 0, %s64
      %s66 = sphi 0, %s64
      %s67 = sphi 0, %s66
      %s81 = sphi 0, %s67
      %s85 = sphi 0, %s85
      %s87 = sphi 0, %s85
      %s88 = sphi 0, %s87
      %s102 = sphi 0, %s88
      %s106 = sphi 0, %s106
      %s108 = sphi 0, %s106
      %s109 = sphi 0, %s108
      %s123 = sphi 0, %s109
      %s127 = sphi 0, %s127
      %s129 = sphi 0, %s127
      %s130 = sphi 0, %s129
      %s144 = sphi 0, %s130
      %s148 = sphi 0, %s148
      %s150 = sphi 0, %s148
      %s151 = sphi 0, %s150
      %s165 = sphi 0, %s151
      %s169 = sphi 0, %s169
      %s171 = sphi 0, %s169
      %s172 = sphi 0, %s171
      %s186 = sphi 0, %s172
      %s192 = sphi 0, %s194
      %s195 = sphi 0, %s192
      %s196 = sphi 0, %s195
      %s212 = sphi 0, %s196
    $region4: #{malconv_forward.1} parent=1 // loop_header_branch
      %19 = sbr.rel (%p17) target = $region8
    $region5: #{malconv_forward.1} parent=1 // loop_body
      %s21 = ssub.s32 %s16, 1
      %s22 = ssub.s32 %s16, 2
      %s29 = sadd.s32 1, %s24
      %p30 = scmp.ge.s32.totalorder %s29, 1
      %s31 = scalar_select %p30, 0, %s29
      %s32 = sadd.s32 1, %s23
      %s33 = scalar_select %p30, %s32, %s23
      %p34 = scmp.ge.s32.totalorder %s33, 2
      %s35 = scalar_select %p34, 0, %s33
      %s36 = ssub.s32 %s23, %s35
      %s37 = ssub.s32 %s24, %s31
      %s38 = sor.u32 %s36, %s37
      %p39 = scmp.eq.s32.totalorder %s38, 0
      %s41 = sadd.s32 %s40, 1
      %s42 = scalar_select %p39, %s40, %s41
      %p45 = pneg %p39
      %p46 = scmp.eq.s32.totalorder %s16, 1
      %p47 = por %p45, %p46
      %p48 = scmp.ne.s32.totalorder %s40, %s43
      %p49 = scmp.eq.s32.totalorder %s16, 0
      %p50 = por %p48, %p49
      %p51 = scmp.ne.s32.totalorder %s40, %s43
      %p52 = scmp.eq.s32.totalorder %s21, 1
      %p53 = por %p51, %p52
      %p54 = scmp.ne.s32.totalorder %s43, %s44
      %p55 = scmp.eq.s32.totalorder %s21, 0
      %p56 = por %p54, %p55
      %p57 = scmp.ne.s32.totalorder %s43, %s44
      %p58 = scmp.eq.s32.totalorder %s22, 1
      %p59 = por %p57, %p58
      %p61 = scmp.ne.s32.totalorder %s44, %s60
      %p62 = scmp.eq.s32.totalorder %s22, 0
      %p63 = por %p61, %p62
      %s65 = sadd.s32 %s64, 1
      %p68 = scmp.eq.s32.totalorder %s16, 1
      %p69 = scmp.ne.s32.totalorder %s64, %s66
      %p70 = scmp.eq.s32.totalorder %s16, 0
      %p71 = por %p69, %p70
      %p72 = scmp.ne.s32.totalorder %s64, %s66
      %p73 = scmp.eq.s32.totalorder %s21, 1
      %p74 = por %p72, %p73
      %p75 = scmp.ne.s32.totalorder %s66, %s67
      %p76 = scmp.eq.s32.totalorder %s21, 0
      %p77 = por %p75, %p76
      %p78 = scmp.ne.s32.totalorder %s66, %s67
      %p79 = scmp.eq.s32.totalorder %s22, 1
      %p80 = por %p78, %p79
      %p82 = scmp.ne.s32.totalorder %s67, %s81
      %p83 = scmp.eq.s32.totalorder %s22, 0
      %p84 = por %p82, %p83
      %s86 = sadd.s32 %s85, 1
      %p89 = scmp.eq.s32.totalorder %s16, 1
      %p90 = scmp.ne.s32.totalorder %s85, %s87
      %p91 = scmp.eq.s32.totalorder %s16, 0
      %p92 = por %p90, %p91
      %p93 = scmp.ne.s32.totalorder %s85, %s87
      %p94 = scmp.eq.s32.totalorder %s21, 1
      %p95 = por %p93, %p94
      %p96 = scmp.ne.s32.totalorder %s87, %s88
      %p97 = scmp.eq.s32.totalorder %s21, 0
      %p98 = por %p96, %p97
      %p99 = scmp.ne.s32.totalorder %s87, %s88
      %p100 = scmp.eq.s32.totalorder %s22, 1
      %p101 = por %p99, %p100
      %p103 = scmp.ne.s32.totalorder %s88, %s102
      %p104 = scmp.eq.s32.totalorder %s22, 0
      %p105 = por %p103, %p104
      %s107 = sadd.s32 %s106, 1
      %p110 = scmp.eq.s32.totalorder %s16, 1
      %p111 = scmp.ne.s32.totalorder %s106, %s108
      %p112 = scmp.eq.s32.totalorder %s16, 0
      %p113 = por %p111, %p112
      %p114 = scmp.ne.s32.totalorder %s106, %s108
      %p115 = scmp.eq.s32.totalorder %s21, 1
      %p116 = por %p114, %p115
      %p117 = scmp.ne.s32.totalorder %s108, %s109
      %p118 = scmp.eq.s32.totalorder %s21, 0
      %p119 = por %p117, %p118
      %p120 = scmp.ne.s32.totalorder %s108, %s109
      %p121 = scmp.eq.s32.totalorder %s22, 1
      %p122 = por %p120, %p121
      %p124 = scmp.ne.s32.totalorder %s109, %s123
      %p125 = scmp.eq.s32.totalorder %s22, 0
      %p126 = por %p124, %p125
      %s128 = sadd.s32 %s127, 1
      %p131 = scmp.eq.s32.totalorder %s16, 1
      %p132 = scmp.ne.s32.totalorder %s127, %s129
      %p133 = scmp.eq.s32.totalorder %s16, 0
      %p134 = por %p132, %p133
      %p135 = scmp.ne.s32.totalorder %s127, %s129
      %p136 = scmp.eq.s32.totalorder %s21, 1
      %p137 = por %p135, %p136
      %p138 = scmp.ne.s32.totalorder %s129, %s130
      %p139 = scmp.eq.s32.totalorder %s21, 0
      %p140 = por %p138, %p139
      %p141 = scmp.ne.s32.totalorder %s129, %s130
      %p142 = scmp.eq.s32.totalorder %s22, 1
      %p143 = por %p141, %p142
      %p145 = scmp.ne.s32.totalorder %s130, %s144
      %p146 = scmp.eq.s32.totalorder %s22, 0
      %p147 = por %p145, %p146
      %s149 = sadd.s32 %s148, 1
      %p152 = scmp.eq.s32.totalorder %s16, 1
      %p153 = scmp.ne.s32.totalorder %s148, %s150
      %p154 = scmp.eq.s32.totalorder %s16, 0
      %p155 = por %p153, %p154
      %p156 = scmp.ne.s32.totalorder %s148, %s150
      %p157 = scmp.eq.s32.totalorder %s21, 1
      %p158 = por %p156, %p157
      %p159 = scmp.ne.s32.totalorder %s150, %s151
      %p160 = scmp.eq.s32.totalorder %s21, 0
      %p161 = por %p159, %p160
      %p162 = scmp.ne.s32.totalorder %s150, %s151
      %p163 = scmp.eq.s32.totalorder %s22, 1
      %p164 = por %p162, %p163
      %p166 = scmp.ne.s32.totalorder %s151, %s165
      %p167 = scmp.eq.s32.totalorder %s22, 0
      %p168 = por %p166, %p167
      %s170 = sadd.s32 %s169, 1
      %p173 = scmp.eq.s32.totalorder %s16, 1
      %p174 = scmp.ne.s32.totalorder %s169, %s171
      %p175 = scmp.eq.s32.totalorder %s16, 0
      %p176 = por %p174, %p175
      %p177 = scmp.ne.s32.totalorder %s169, %s171
      %p178 = scmp.eq.s32.totalorder %s21, 1
      %p179 = por %p177, %p178
      %p180 = scmp.ne.s32.totalorder %s171, %s172
      %p181 = scmp.eq.s32.totalorder %s21, 0
      %p182 = por %p180, %p181
      %p183 = scmp.ne.s32.totalorder %s171, %s172
      %p184 = scmp.eq.s32.totalorder %s22, 1
      %p185 = por %p183, %p184
      %p187 = scmp.ne.s32.totalorder %s172, %s186
      %p188 = scmp.eq.s32.totalorder %s22, 0
      %p189 = por %p187, %p188
      %s190 = ssub.s32 %s23, %s35
      %p191 = scmp.eq.s32.totalorder %s190, 0
      %s193 = sadd.s32 %s192, 1
      %s194 = scalar_select %p191, %s192, %s193
      %p197 = pneg %p191
      %p198 = scmp.eq.s32.totalorder %s16, 1
      %p199 = por %p197, %p198
      %p200 = scmp.ne.s32.totalorder %s192, %s195
      %p201 = scmp.eq.s32.totalorder %s16, 0
      %p202 = por %p200, %p201
      %p203 = scmp.ne.s32.totalorder %s192, %s195
      %p204 = scmp.eq.s32.totalorder %s21, 1
      %p205 = por %p203, %p204
      %p206 = scmp.ne.s32.totalorder %s195, %s196
      %p207 = scmp.eq.s32.totalorder %s21, 0
      %p208 = por %p206, %p207
      %p209 = scmp.ne.s32.totalorder %s195, %s196
      %p210 = scmp.eq.s32.totalorder %s22, 1
      %p211 = por %p209, %p210
      %p213 = scmp.ne.s32.totalorder %s196, %s212
      %p214 = scmp.eq.s32.totalorder %s22, 0
      %p215 = por %p213, %p214
      %p216 = scmp.le.s32.totalorder 1, %s16
      %p217 = scmp.lt.s32.totalorder %s16, 3
      %p218 = pnand %p216, %p217
      %p219 = pneg %p218
      // Predicated region
      $region9: #{malconv_forward.1} parent=5 // pred_check
        _
      $region10: #{malconv_forward.1} parent=5 // pred_check_branch
        %221 = sbr.rel (%p218) target = $region12
      $region11: #{malconv_forward.1} parent=5 // pred_region
        %s222 = ssub.s32 %s16, 1
        // Predicated region
        $region13: #{malconv_forward.1} parent=11 // pred_check
          %p223 = pneg %p77
        $region14: #{malconv_forward.1} parent=11 // pred_check_branch
          %225 = sbr.rel (%p223) target = $region16
        $region15: #{malconv_forward.1} parent=11 // pred_region
          _
        $region16: #{malconv_forward.1} parent=11 // pred_fallthru
          _
        // Predicated region
        $region17: #{malconv_forward.1} parent=11 // pred_check
          %p226 = pneg %p98
        $region18: #{malconv_forward.1} parent=11 // pred_check_branch
          %228 = sbr.rel (%p226) target = $region20
        $region19: #{malconv_forward.1} parent=11 // pred_region
          _
        $region20: #{malconv_forward.1} parent=11 // pred_fallthru
          _
        // Predicated region
        $region21: #{malconv_forward.1} parent=11 // pred_check
          %p229 = pneg %p119
        $region22: #{malconv_forward.1} parent=11 // pred_check_branch
          %231 = sbr.rel (%p229) target = $region24
        $region23: #{malconv_forward.1} parent=11 // pred_region
          _
        $region24: #{malconv_forward.1} parent=11 // pred_fallthru
          _
        // Predicated region
        $region25: #{malconv_forward.1} parent=11 // pred_check
          %p232 = pneg %p140
        $region26: #{malconv_forward.1} parent=11 // pred_check_branch
          %234 = sbr.rel (%p232) target = $region28
        $region27: #{malconv_forward.1} parent=11 // pred_region
          _
        $region28: #{malconv_forward.1} parent=11 // pred_fallthru
          _
        // Predicated region
        $region29: #{malconv_forward.1} parent=11 // pred_check
          %p235 = pneg %p161
        $region30: #{malconv_forward.1} parent=11 // pred_check_branch
          %237 = sbr.rel (%p235) target = $region32
        $region31: #{malconv_forward.1} parent=11 // pred_region
          _
        $region32: #{malconv_forward.1} parent=11 // pred_fallthru
          _
        // Predicated region
        $region33: #{malconv_forward.1} parent=11 // pred_check
          %p238 = pneg %p182
        $region34: #{malconv_forward.1} parent=11 // pred_check_branch
          %240 = sbr.rel (%p238) target = $region36
        $region35: #{malconv_forward.1} parent=11 // pred_region
          _
        $region36: #{malconv_forward.1} parent=11 // pred_fallthru
          _
      $region12: #{malconv_forward.1} parent=5 // pred_fallthru
        _
      %p241 = scmp.lt.s32.totalorder %s16, 2
      // Predicated region
      $region37: #{malconv_forward.1} parent=5 // pred_check
        %p242 = pneg %p241
      $region38: #{malconv_forward.1} parent=5 // pred_check_branch
        %244 = sbr.rel (%p242) target = $region40
      $region39: #{malconv_forward.1} parent=5 // pred_region
        // Predicated region
        $region41: #{malconv_forward.1} parent=39 // pred_check
          %p245 = pneg %p50
        $region42: #{malconv_forward.1} parent=39 // pred_check_branch
          %247 = sbr.rel (%p245) target = $region44
        $region43: #{malconv_forward.1} parent=39 // pred_region
          %s248 = smul.u32 2, %s24
          %p249 = scmp.lt.s32.totalorder %s23, 1
          %s250 = scalar_select %p249, %s23, 1
          %p251 = scmp.lt.s32.totalorder %s248, 1
          %s252 = scalar_select %p251, %s248, 1
          %s253 = smul.addr %s252, 4
          %s254 = smul.addr %s250, 8
          %s255 = sadd.s32 %s253, %s254
          %s256 = smul.addr %s255, 8
          %s257 = scalar_lea.vmem %s0, %s256
          %s258 = smul.u32 2, %s24
        $region44: #{malconv_forward.1} parent=39 // pred_fallthru
          _
      $region40: #{malconv_forward.1} parent=5 // pred_fallthru
        _
      %p259 = scmp.le.s32.totalorder 1, %s16
      %p260 = scmp.lt.s32.totalorder %s16, 3
      %p261 = pnand %p259, %p260
      %p262 = pneg %p261
      // Predicated region
      $region45: #{malconv_forward.1} parent=5 // pred_check
        _
      $region46: #{malconv_forward.1} parent=5 // pred_check_branch
        %264 = sbr.rel (%p261) target = $region48
      $region47: #{malconv_forward.1} parent=5 // pred_region
        %s265 = ssub.s32 %s16, 1
        %s266 = smul.u32 2, %s26
        %p267 = scmp.lt.s32.totalorder %s25, 1
        %s268 = scalar_select %p267, %s25, 1
        %p269 = scmp.lt.s32.totalorder %s266, 1
        %s270 = scalar_select %p269, %s266, 1
        %s271 = smul.addr %s270, 4
        %s272 = smul.addr %s268, 8
        %s273 = sadd.s32 %s271, %s272
        %s274 = smul.addr %s273, 8
        %s275 = scalar_lea.vmem %s0, %s274
        %p276 = pneg %p56
        %p277 = pneg %p53
        %p278 = pneg %p77
        %p279 = pneg %p74
        %p280 = pneg %p98
        %p281 = pneg %p95
        %p282 = pneg %p119
        %p283 = pneg %p116
        %p284 = pneg %p140
        %p285 = pneg %p137
        %p286 = pneg %p161
        %p287 = pneg %p158
        %p288 = pneg %p182
        %p289 = pneg %p179
        %p290 = pneg %p208
        %p291 = pneg %p205
        %s292 = sand.u32 %s195, 1
        %s293 = scalar_lea.sflag [#allocation4], %s292
        %s294 = sand.u32 %s195, 1
        %s295 = scalar_lea.vmem [#allocation3], %s294
        %s296 = smul.u32 2, %s26
        %p297 = scmp.lt.s32.totalorder %s25, 1
        %s298 = scalar_select %p297, %s25, 1
        %p299 = scmp.lt.s32.totalorder %s296, 1
        %s300 = scalar_select %p299, %s296, 1
        %s301 = smul.addr %s300, 4
        %s302 = smul.addr %s298, 8
        %s303 = sadd.s32 %s301, %s302
        %s304 = smul.addr %s303, 8
        %s305 = scalar_lea.vmem %s0, %s304
        %s306 = smul.u32 2, %s26
        %p307 = scmp.eq.s32.totalorder %s26, 0
        // Predicated region
        $region49: #{malconv_forward.1} parent=47 // pred_check
          %p308 = pneg %p307
        $region50: #{malconv_forward.1} parent=47 // pred_check_branch
          %310 = sbr.rel (%p308) target = $region52
        $region51: #{malconv_forward.1} parent=47 // pred_region
          %311 = vst [vmem:[#allocation2] sm:$0x1] -inf
        $region52: #{malconv_forward.1} parent=47 // pred_fallthru
          _
        %v312 = vld [vmem:[%s305] sm:$0xff]
        %v313 = vld [vmem:[%s305 + $0x8] sm:$0xff]
        %v314 = vld [vmem:[%s305 + $0x10] sm:$0xff]
        %v315 = vld [vmem:[%s305 + $0x18] sm:$0xff]
        %v316 = vld [vmem:[%s305 + $0x20] sm:$0xff]
        %v317 = vld [vmem:[%s305 + $0x28] sm:$0xff]
        %v318 = vld [vmem:[%s305 + $0x30] sm:$0xff]
        %v319 = vld [vmem:[%s305 + $0x38] sm:$0xff]
        %v320 = vpack.c.bf16 %v316, %v312
        %v321 = vpack.c.bf16 %v317, %v313
        %v322 = vpack.c.bf16 %v318, %v314
        %v323 = vpack.c.bf16 %v319, %v315
        %v324 = vld [vmem:[%s1] sm:$0xff]
        %v325 = vld [vmem:[%s1 + $0x8] sm:$0xff]
        %v326 = vld [vmem:[%s1 + $0x10] sm:$0xff]
        %v327 = vld [vmem:[%s1 + $0x18] sm:$0xff]
        %v328 = vld [vmem:[%s1 + $0x20] sm:$0xff]
        %v329 = vld [vmem:[%s1 + $0x28] sm:$0xff]
        %v330 = vld [vmem:[%s1 + $0x30] sm:$0xff]
        %v331 = vld [vmem:[%s1 + $0x38] sm:$0xff]
        %v332 = vld [vmem:[%s1 + $0x40] sm:$0xff]
        %v333 = vld [vmem:[%s1 + $0x48] sm:$0xff]
        %v334 = vld [vmem:[%s1 + $0x50] sm:$0xff]
        %v335 = vld [vmem:[%s1 + $0x58] sm:$0xff]
        %v336 = vld [vmem:[%s1 + $0x60] sm:$0xff]
        %v337 = vld [vmem:[%s1 + $0x68] sm:$0xff]
        %v338 = vld [vmem:[%s1 + $0x70] sm:$0xff]
        %v339 = vld [vmem:[%s1 + $0x78] sm:$0xff]
        %v340 = vld [vmem:[%s1 + $0x80] sm:$0xff]
        %v341 = vld [vmem:[%s1 + $0x88] sm:$0xff]
        %v342 = vld [vmem:[%s1 + $0x90] sm:$0xff]
        %v343 = vld [vmem:[%s1 + $0x98] sm:$0xff]
        %v344 = vld [vmem:[%s1 + $0xa0] sm:$0xff]
        %v345 = vld [vmem:[%s1 + $0xa8] sm:$0xff]
        %v346 = vld [vmem:[%s1 + $0xb0] sm:$0xff]
        %v347 = vld [vmem:[%s1 + $0xb8] sm:$0xff]
        %v348 = vld [vmem:[%s1 + $0xc0] sm:$0xff]
        %v349 = vld [vmem:[%s1 + $0xc8] sm:$0xff]
        %v350 = vld [vmem:[%s1 + $0xd0] sm:$0xff]
        %v351 = vld [vmem:[%s1 + $0xd8] sm:$0xff]
        %v352 = vld [vmem:[%s1 + $0xe0] sm:$0xff]
        %v353 = vld [vmem:[%s1 + $0xe8] sm:$0xff]
        %v354 = vld [vmem:[%s1 + $0xf0] sm:$0xff]
        %v355 = vld [vmem:[%s1 + $0xf8] sm:$0xff]
        %v356 = vld [vmem:[%s1 + $0x100] sm:$0xff]
        %v357 = vld [vmem:[%s1 + $0x108] sm:$0xff]
        %v358 = vld [vmem:[%s1 + $0x110] sm:$0xff]
        %v359 = vld [vmem:[%s1 + $0x118] sm:$0xff]
        %v360 = vld [vmem:[%s1 + $0x120] sm:$0xff]
        %v361 = vld [vmem:[%s1 + $0x128] sm:$0xff]
        %v362 = vld [vmem:[%s1 + $0x130] sm:$0xff]
        %v363 = vld [vmem:[%s1 + $0x138] sm:$0xff]
        %v364 = vld [vmem:[%s1 + $0x140] sm:$0xff]
        %v365 = vld [vmem:[%s1 + $0x148] sm:$0xff]
        %v366 = vld [vmem:[%s1 + $0x150] sm:$0xff]
        %v367 = vld [vmem:[%s1 + $0x158] sm:$0xff]
        %v368 = vld [vmem:[%s1 + $0x160] sm:$0xff]
        %v369 = vld [vmem:[%s1 + $0x168] sm:$0xff]
        %v370 = vld [vmem:[%s1 + $0x170] sm:$0xff]
        %v371 = vld [vmem:[%s1 + $0x178] sm:$0xff]
        %v372 = vld [vmem:[%s1 + $0x180] sm:$0xff]
        %v373 = vld [vmem:[%s1 + $0x188] sm:$0xff]
        %v374 = vld [vmem:[%s1 + $0x190] sm:$0xff]
        %v375 = vld [vmem:[%s1 + $0x198] sm:$0xff]
        %v376 = vld [vmem:[%s1 + $0x1a0] sm:$0xff]
        %v377 = vld [vmem:[%s1 + $0x1a8] sm:$0xff]
        %v378 = vld [vmem:[%s1 + $0x1b0] sm:$0xff]
        %v379 = vld [vmem:[%s1 + $0x1b8] sm:$0xff]
        %v380 = vld [vmem:[%s1 + $0x1c0] sm:$0xff]
        %v381 = vld [vmem:[%s1 + $0x1c8] sm:$0xff]
        %v382 = vld [vmem:[%s1 + $0x1d0] sm:$0xff]
        %v383 = vld [vmem:[%s1 + $0x1d8] sm:$0xff]
        %v384 = vld [vmem:[%s1 + $0x1e0] sm:$0xff]
        %v385 = vld [vmem:[%s1 + $0x1e8] sm:$0xff]
        %v386 = vld [vmem:[%s1 + $0x1f0] sm:$0xff]
        %v387 = vld [vmem:[%s1 + $0x1f8] sm:$0xff]
        %v388 = vld [vmem:[%s2] sm:$0x3]
        %v390 = vlaneseq
        %v391 = vshrl.u32 %v390, 7
        %v392 = vsub.s32 0, %v391
        %v393 = vrot.slane %v388, %v392
        %v394 = vlaneseq
        %v395 = vshrl.u32 %v394, 7
        %v396 = vsub.s32 1, %v395
        %v397 = vrot.slane %v388, %v396
        %v464 = vunpack.c.l.b16 %v324
        %v465 = vunpack.c.h.b16 %v324
        %v466 = vunpack.c.l.b16 %v325
        %v467 = vunpack.c.h.b16 %v325
        %v468 = vunpack.c.l.b16 %v326
        %v469 = vunpack.c.h.b16 %v326
        %v470 = vunpack.c.l.b16 %v327
        %v471 = vunpack.c.h.b16 %v327
        %v472 = vunpack.c.l.b16 %v328
        %v473 = vunpack.c.h.b16 %v328
        %v474 = vunpack.c.l.b16 %v329
        %v475 = vunpack.c.h.b16 %v329
        %v476 = vunpack.c.l.b16 %v330
        %v477 = vunpack.c.h.b16 %v330
        %v478 = vunpack.c.l.b16 %v331
        %v479 = vunpack.c.h.b16 %v331
        %v480 = vunpack.c.l.b16 %v332
        %v481 = vunpack.c.h.b16 %v332
        %v482 = vunpack.c.l.b16 %v333
        %v483 = vunpack.c.h.b16 %v333
        %v484 = vunpack.c.l.b16 %v334
        %v485 = vunpack.c.h.b16 %v334
        %v486 = vunpack.c.l.b16 %v335
        %v487 = vunpack.c.h.b16 %v335
        %v488 = vunpack.c.l.b16 %v336
        %v489 = vunpack.c.h.b16 %v336
        %v490 = vunpack.c.l.b16 %v337
        %v491 = vunpack.c.h.b16 %v337
        %v492 = vunpack.c.l.b16 %v338
        %v493 = vunpack.c.h.b16 %v338
        %v494 = vunpack.c.l.b16 %v339
        %v495 = vunpack.c.h.b16 %v339
        %v496 = vunpack.c.l.b16 %v340
        %v497 = vunpack.c.h.b16 %v340
        %v498 = vunpack.c.l.b16 %v341
        %v499 = vunpack.c.h.b16 %v341
        %v500 = vunpack.c.l.b16 %v342
        %v501 = vunpack.c.h.b16 %v342
        %v502 = vunpack.c.l.b16 %v343
        %v503 = vunpack.c.h.b16 %v343
        %v504 = vunpack.c.l.b16 %v344
        %v505 = vunpack.c.h.b16 %v344
        %v506 = vunpack.c.l.b16 %v345
        %v507 = vunpack.c.h.b16 %v345
        %v508 = vunpack.c.l.b16 %v346
        %v509 = vunpack.c.h.b16 %v346
        %v510 = vunpack.c.l.b16 %v347
        %v511 = vunpack.c.h.b16 %v347
        %v512 = vunpack.c.l.b16 %v348
        %v513 = vunpack.c.h.b16 %v348
        %v514 = vunpack.c.l.b16 %v349
        %v515 = vunpack.c.h.b16 %v349
        %v516 = vunpack.c.l.b16 %v350
        %v517 = vunpack.c.h.b16 %v350
        %v518 = vunpack.c.l.b16 %v351
        %v519 = vunpack.c.h.b16 %v351
        %v520 = vunpack.c.l.b16 %v352
        %v521 = vunpack.c.h.b16 %v352
        %v522 = vunpack.c.l.b16 %v353
        %v523 = vunpack.c.h.b16 %v353
        %v524 = vunpack.c.l.b16 %v354
        %v525 = vunpack.c.h.b16 %v354
        %v526 = vunpack.c.l.b16 %v355
        %v527 = vunpack.c.h.b16 %v355
        %v528 = vunpack.c.l.b16 %v356
        %v529 = vunpack.c.h.b16 %v356
        %v530 = vunpack.c.l.b16 %v357
        %v531 = vunpack.c.h.b16 %v357
        %v532 = vunpack.c.l.b16 %v358
        %v533 = vunpack.c.h.b16 %v358
        %v534 = vunpack.c.l.b16 %v359
        %v535 = vunpack.c.h.b16 %v359
        %v536 = vunpack.c.l.b16 %v360
        %v537 = vunpack.c.h.b16 %v360
        %v538 = vunpack.c.l.b16 %v361
        %v539 = vunpack.c.h.b16 %v361
        %v540 = vunpack.c.l.b16 %v362
        %v541 = vunpack.c.h.b16 %v362
        %v542 = vunpack.c.l.b16 %v363
        %v543 = vunpack.c.h.b16 %v363
        %v544 = vunpack.c.l.b16 %v364
        %v545 = vunpack.c.h.b16 %v364
        %v546 = vunpack.c.l.b16 %v365
        %v547 = vunpack.c.h.b16 %v365
        %v548 = vunpack.c.l.b16 %v366
        %v549 = vunpack.c.h.b16 %v366
        %v550 = vunpack.c.l.b16 %v367
        %v551 = vunpack.c.h.b16 %v367
        %v552 = vunpack.c.l.b16 %v368
        %v553 = vunpack.c.h.b16 %v368
        %v554 = vunpack.c.l.b16 %v369
        %v555 = vunpack.c.h.b16 %v369
        %v556 = vunpack.c.l.b16 %v370
        %v557 = vunpack.c.h.b16 %v370
        %v558 = vunpack.c.l.b16 %v371
        %v559 = vunpack.c.h.b16 %v371
        %v560 = vunpack.c.l.b16 %v372
        %v561 = vunpack.c.h.b16 %v372
        %v562 = vunpack.c.l.b16 %v373
        %v563 = vunpack.c.h.b16 %v373
        %v564 = vunpack.c.l.b16 %v374
        %v565 = vunpack.c.h.b16 %v374
        %v566 = vunpack.c.l.b16 %v375
        %v567 = vunpack.c.h.b16 %v375
        %v568 = vunpack.c.l.b16 %v376
        %v569 = vunpack.c.h.b16 %v376
        %v570 = vunpack.c.l.b16 %v377
        %v571 = vunpack.c.h.b16 %v377
        %v572 = vunpack.c.l.b16 %v378
        %v573 = vunpack.c.h.b16 %v378
        %v574 = vunpack.c.l.b16 %v379
        %v575 = vunpack.c.h.b16 %v379
        %v576 = vunpack.c.l.b16 %v380
        %v577 = vunpack.c.h.b16 %v380
        %v578 = vunpack.c.l.b16 %v381
        %v579 = vunpack.c.h.b16 %v381
        %v580 = vunpack.c.l.b16 %v382
        %v581 = vunpack.c.h.b16 %v382
        %v582 = vunpack.c.l.b16 %v383
        %v583 = vunpack.c.h.b16 %v383
        %v584 = vunpack.c.l.b16 %v384
        %v585 = vunpack.c.h.b16 %v384
        %v586 = vunpack.c.l.b16 %v385
        %v587 = vunpack.c.h.b16 %v385
        %v588 = vunpack.c.l.b16 %v386
        %v589 = vunpack.c.h.b16 %v386
        %v590 = vunpack.c.l.b16 %v387
        %v591 = vunpack.c.h.b16 %v387
        %v592 = vpack.c.b16 %v466, %v464
        %v593 = vpack.c.b16 %v467, %v465
        %v594 = vpack.c.b16 %v470, %v468
        %v595 = vpack.c.b16 %v471, %v469
        %v596 = vpack.c.b16 %v474, %v472
        %v597 = vpack.c.b16 %v475, %v473
        %v598 = vpack.c.b16 %v478, %v476
        %v599 = vpack.c.b16 %v479, %v477
        %v600 = vpack.c.b16 %v482, %v480
        %v601 = vpack.c.b16 %v483, %v481
        %v602 = vpack.c.b16 %v486, %v484
        %v603 = vpack.c.b16 %v487, %v485
        %v604 = vpack.c.b16 %v490, %v488
        %v605 = vpack.c.b16 %v491, %v489
        %v606 = vpack.c.b16 %v494, %v492
        %v607 = vpack.c.b16 %v495, %v493
        %v608 = vpack.c.b16 %v498, %v496
        %v609 = vpack.c.b16 %v499, %v497
        %v610 = vpack.c.b16 %v502, %v500
        %v611 = vpack.c.b16 %v503, %v501
        %v612 = vpack.c.b16 %v506, %v504
        %v613 = vpack.c.b16 %v507, %v505
        %v614 = vpack.c.b16 %v510, %v508
        %v615 = vpack.c.b16 %v511, %v509
        %v616 = vpack.c.b16 %v514, %v512
        %v617 = vpack.c.b16 %v515, %v513
        %v618 = vpack.c.b16 %v518, %v516
        %v619 = vpack.c.b16 %v519, %v517
        %v620 = vpack.c.b16 %v522, %v520
        %v621 = vpack.c.b16 %v523, %v521
        %v622 = vpack.c.b16 %v526, %v524
        %v623 = vpack.c.b16 %v527, %v525
        %v624 = vpack.c.b16 %v530, %v528
        %v625 = vpack.c.b16 %v531, %v529
        %v626 = vpack.c.b16 %v534, %v532
        %v627 = vpack.c.b16 %v535, %v533
        %v628 = vpack.c.b16 %v538, %v536
        %v629 = vpack.c.b16 %v539, %v537
        %v630 = vpack.c.b16 %v542, %v540
        %v631 = vpack.c.b16 %v543, %v541
        %v632 = vpack.c.b16 %v546, %v544
        %v633 = vpack.c.b16 %v547, %v545
        %v634 = vpack.c.b16 %v550, %v548
        %v635 = vpack.c.b16 %v551, %v549
        %v636 = vpack.c.b16 %v554, %v552
        %v637 = vpack.c.b16 %v555, %v553
        %v638 = vpack.c.b16 %v558, %v556
        %v639 = vpack.c.b16 %v559, %v557
        %v640 = vpack.c.b16 %v562, %v560
        %v641 = vpack.c.b16 %v563, %v561
        %v642 = vpack.c.b16 %v566, %v564
        %v643 = vpack.c.b16 %v567, %v565
        %v644 = vpack.c.b16 %v570, %v568
        %v645 = vpack.c.b16 %v571, %v569
        %v646 = vpack.c.b16 %v574, %v572
        %v647 = vpack.c.b16 %v575, %v573
        %v648 = vpack.c.b16 %v578, %v576
        %v649 = vpack.c.b16 %v579, %v577
        %v650 = vpack.c.b16 %v582, %v580
        %v651 = vpack.c.b16 %v583, %v581
        %v652 = vpack.c.b16 %v586, %v584
        %v653 = vpack.c.b16 %v587, %v585
        %v654 = vpack.c.b16 %v590, %v588
        %v655 = vpack.c.b16 %v591, %v589
        %720 = vmatprep.subr.bf16.mxu0 %v607
        %721 = vmatpush1.bf16.msra.mxu0 %v606
        %722 = vmatprep.subr.bf16.mxu0 %v605
        %723 = vmatpush1.bf16.msra.mxu0 %v604
        %724 = vmatprep.subr.bf16.mxu0 %v603
        %725 = vmatpush1.bf16.msra.mxu0 %v602
        %726 = vmatprep.subr.bf16.mxu0 %v601
        %727 = vmatpush1.bf16.msra.mxu0 %v600
        %728 = vmatprep.subr.bf16.mxu0 %v599
        %729 = vmatpush1.bf16.msra.mxu0 %v598
        %730 = vmatprep.subr.bf16.mxu0 %v597
        %731 = vmatpush1.bf16.msra.mxu0 %v596
        %732 = vmatprep.subr.bf16.mxu0 %v595
        %733 = vmatpush1.bf16.msra.mxu0 %v594
        %734 = vmatprep.subr.bf16.mxu0 %v593
        %735 = vmatpush1.bf16.msra.mxu0 %v592
        %736 = vmatprep.subr.bf16.mxu0 %v623
        %737 = vmatpush2.bf16.msra.mxu0 %v622
        %738 = vmatprep.subr.bf16.mxu0 %v621
        %739 = vmatpush2.bf16.msra.mxu0 %v620
        %740 = vmatprep.subr.bf16.mxu0 %v619
        %741 = vmatpush2.bf16.msra.mxu0 %v618
        %742 = vmatprep.subr.bf16.mxu0 %v617
        %743 = vmatpush2.bf16.msra.mxu0 %v616
        %744 = vmatprep.subr.bf16.mxu0 %v615
        %745 = vmatpush2.bf16.msra.mxu0 %v614
        %746 = vmatprep.subr.bf16.mxu0 %v613
        %747 = vmatpush2.bf16.msra.mxu0 %v612
        %748 = vmatprep.subr.bf16.mxu0 %v611
        %749 = vmatpush2.bf16.msra.mxu0 %v610
        %750 = vmatprep.subr.bf16.mxu0 %v609
        %751 = vmatpush2.bf16.msra.mxu0 %v608
        %752 = vmatprep.mubr.bf16.mxu0 %v321
        %753 = vmatmul.mubr.bf16.gmra.mxu0 %v320
        %v754 = vpop.f32.mrf.mxu0
        %v755 = vadd.f32 %v393, %v754
        %v756 = vpop.f32.mrf.mxu0
        %v757 = vadd.f32 %v397, %v756
        %v758 = vpop.f32.mrf.mxu0
        %v759 = vadd.f32 %v393, %v758
        %v760 = vpop.f32.mrf.mxu0
        %v761 = vadd.f32 %v397, %v760
        %762 = vdwg.mxu0
        %763 = vmatprep.subr.bf16.mxu0 %v639
        %764 = vmatpush1.bf16.msra.mxu0 %v638
        %765 = vmatprep.subr.bf16.mxu0 %v637
        %766 = vmatpush1.bf16.msra.mxu0 %v636
        %767 = vmatprep.subr.bf16.mxu0 %v635
        %768 = vmatpush1.bf16.msra.mxu0 %v634
        %769 = vmatprep.subr.bf16.mxu0 %v633
        %770 = vmatpush1.bf16.msra.mxu0 %v632
        %771 = vmatprep.subr.bf16.mxu0 %v631
        %772 = vmatpush1.bf16.msra.mxu0 %v630
        %773 = vmatprep.subr.bf16.mxu0 %v629
        %774 = vmatpush1.bf16.msra.mxu0 %v628
        %775 = vmatprep.subr.bf16.mxu0 %v627
        %776 = vmatpush1.bf16.msra.mxu0 %v626
        %777 = vmatprep.subr.bf16.mxu0 %v625
        %778 = vmatpush1.bf16.msra.mxu0 %v624
        %779 = vmatprep.subr.bf16.mxu0 %v655
        %780 = vmatpush2.bf16.msra.mxu0 %v654
        %781 = vmatprep.subr.bf16.mxu0 %v653
        %782 = vmatpush2.bf16.msra.mxu0 %v652
        %783 = vmatprep.subr.bf16.mxu0 %v651
        %784 = vmatpush2.bf16.msra.mxu0 %v650
        %785 = vmatprep.subr.bf16.mxu0 %v649
        %786 = vmatpush2.bf16.msra.mxu0 %v648
        %787 = vmatprep.subr.bf16.mxu0 %v647
        %788 = vmatpush2.bf16.msra.mxu0 %v646
        %789 = vmatprep.subr.bf16.mxu0 %v645
        %790 = vmatpush2.bf16.msra.mxu0 %v644
        %791 = vmatprep.subr.bf16.mxu0 %v643
        %792 = vmatpush2.bf16.msra.mxu0 %v642
        %793 = vmatprep.subr.bf16.mxu0 %v641
        %794 = vmatpush2.bf16.msra.mxu0 %v640
        %795 = vmatprep.mubr.bf16.mxu0 %v323
        %796 = vmatmul.mubr.bf16.gmra.mxu0 %v322
        %v797 = vpop.f32.mrf.mxu0
        %v798 = vadd.f32 %v755, %v797
        %v799 = vpop.f32.mrf.mxu0
        %v800 = vadd.f32 %v757, %v799
        %v801 = vpop.f32.mrf.mxu0
        %v802 = vadd.f32 %v759, %v801
        %v803 = vpop.f32.mrf.mxu0
        %v804 = vadd.f32 %v761, %v803
        %805 = vdwg.mxu0
        %v806 = vxor.u32 %v800, 2147483648
        %v807 = vxor.u32 %v804, 2147483648
        %v808 = vmul.f32 %v806, 1.442695
        %v809 = vpow.pop %v808
        %v810 = vmul.f32 %v807, 1.442695
        %v811 = vpow.pop %v810
        %v812 = vadd.f32 %v809, 1.0
        %v813 = vadd.f32 %v811, 1.0
        %v814 = vrcp.pop %v812
        %v815 = vmul.f32 1.0, %v814
        %v816 = vrcp.pop %v813
        %v817 = vmul.f32 1.0, %v816
        %v818 = vmul.f32 %v798, %v815
        %v819 = vmul.f32 %v802, %v817
        %v820 = vld [vmem:[#allocation2] sm:$0x1]
        %v821 = vmax.f32 %v818, %v819
        %v822 = vrot.slane %v821, 4
        %v823 = vmax.f32 %v821, %v822
        %v824 = vrot.slane %v823, 2
        %v825 = vmax.f32 %v823, %v824
        %v826 = vrot.slane %v825, 1
        %v827 = vmax.f32 %v825, %v826
        %v828 = vmax.f32 %v820, %v827
        %829 = vst [vmem:[#allocation2] sm:$0x1] %v828
        // Predicated region
        $region53: #{malconv_forward.1} parent=47 // pred_check
          %p830 = pneg %p307
        $region54: #{malconv_forward.1} parent=47 // pred_check_branch
          %832 = sbr.rel (%p830) target = $region56
        $region55: #{malconv_forward.1} parent=47 // pred_region
          %v833 = vld [vmem:[#allocation2] sm:$0x1]
          %v834 = vld [vmem:[%s3] sm:$0xff]
          %v835 = vld [vmem:[%s3 + $0x8] sm:$0xff]
          %v836 = vld [vmem:[%s3 + $0x10] sm:$0xff]
          %v837 = vld [vmem:[%s3 + $0x18] sm:$0xff]
          %v838 = vld [vmem:[%s3 + $0x20] sm:$0xff]
          %v839 = vld [vmem:[%s3 + $0x28] sm:$0xff]
          %v840 = vld [vmem:[%s3 + $0x30] sm:$0xff]
          %v841 = vld [vmem:[%s3 + $0x38] sm:$0xff]
          %v842 = vld [vmem:[%s3 + $0x40] sm:$0xff]
          %v843 = vld [vmem:[%s3 + $0x48] sm:$0xff]
          %v844 = vld [vmem:[%s3 + $0x50] sm:$0xff]
          %v845 = vld [vmem:[%s3 + $0x58] sm:$0xff]
          %v846 = vld [vmem:[%s3 + $0x60] sm:$0xff]
          %v847 = vld [vmem:[%s3 + $0x68] sm:$0xff]
          %v848 = vld [vmem:[%s3 + $0x70] sm:$0xff]
          %v849 = vld [vmem:[%s3 + $0x78] sm:$0xff]
          %v850 = vld [vmem:[%s4] sm:$0x1]
          %851 = vmatprep.subr.mxu0 0.0
          %852 = vmatpush1.msra.mxu0 %v849
          %853 = vmatprep.subr.mxu0 0.0
          %854 = vmatpush1.msra.mxu0 %v848
          %855 = vmatprep.subr.mxu0 0.0
          %856 = vmatpush1.msra.mxu0 %v847
          %857 = vmatprep.subr.mxu0 0.0
          %858 = vmatpush1.msra.mxu0 %v846
          %859 = vmatprep.subr.mxu0 0.0
          %860 = vmatpush1.msra.mxu0 %v845
          %861 = vmatprep.subr.mxu0 0.0
          %862 = vmatpush1.msra.mxu0 %v844
          %863 = vmatprep.subr.mxu0 0.0
          %864 = vmatpush1.msra.mxu0 %v843
          %865 = vmatprep.subr.mxu0 0.0
          %866 = vmatpush1.msra.mxu0 %v842
          %867 = vmatprep.subr.mxu0 0.0
          %868 = vmatpush1.msra.mxu0 %v841
          %869 = vmatprep.subr.mxu0 0.0
          %870 = vmatpush1.msra.mxu0 %v840
          %871 = vmatprep.subr.mxu0 0.0
          %872 = vmatpush1.msra.mxu0 %v839
          %873 = vmatprep.subr.mxu0 0.0
          %874 = vmatpush1.msra.mxu0 %v838
          %875 = vmatprep.subr.mxu0 0.0
          %876 = vmatpush1.msra.mxu0 %v837
          %877 = vmatprep.subr.mxu0 0.0
          %878 = vmatpush1.msra.mxu0 %v836
          %879 = vmatprep.subr.mxu0 0.0
          %880 = vmatpush1.msra.mxu0 %v835
          %881 = vmatprep.subr.mxu0 0.0
          %882 = vmatpush1.msra.mxu0 %v834
          %883 = vmatprep.subr.mxu0 0.0
          %884 = vmatpush2.msra.mxu0 0.0
          %885 = vmatprep.subr.mxu0 0.0
          %886 = vmatpush2.msra.mxu0 0.0
          %887 = vmatprep.subr.mxu0 0.0
          %888 = vmatpush2.msra.mxu0 0.0
          %889 = vmatprep.subr.mxu0 0.0
          %890 = vmatpush2.msra.mxu0 0.0
          %891 = vmatprep.subr.mxu0 0.0
          %892 = vmatpush2.msra.mxu0 0.0
          %893 = vmatprep.subr.mxu0 0.0
          %894 = vmatpush2.msra.mxu0 0.0
          %895 = vmatprep.subr.mxu0 0.0
          %896 = vmatpush2.msra.mxu0 0.0
          %897 = vmatprep.subr.mxu0 0.0
          %898 = vmatpush2.msra.mxu0 0.0
          %899 = vmatprep.subr.mxu0 0.0
          %900 = vmatpush2.msra.mxu0 0.0
          %901 = vmatprep.subr.mxu0 0.0
          %902 = vmatpush2.msra.mxu0 0.0
          %903 = vmatprep.subr.mxu0 0.0
          %904 = vmatpush2.msra.mxu0 0.0
          %905 = vmatprep.subr.mxu0 0.0
          %906 = vmatpush2.msra.mxu0 0.0
          %907 = vmatprep.subr.mxu0 0.0
          %908 = vmatpush2.msra.mxu0 0.0
          %909 = vmatprep.subr.mxu0 0.0
          %910 = vmatpush2.msra.mxu0 0.0
          %911 = vmatprep.subr.mxu0 0.0
          %912 = vmatpush2.msra.mxu0 0.0
          %913 = vmatprep.subr.mxu0 0.0
          %914 = vmatpush2.msra.mxu0 0.0
          %915 = vmatprep.mubr.f32.mxu0 0.0
          %916 = vmatmul.mubr.f32.gmra.mxu0 %v833
          %v917 = vpop.f32.mrf.mxu0
          %v918 = vadd.f32 %v850, %v917
          %v919 = vpop.f32.mrf.mxu0
          %920 = vdwg.mxu0
          %v921 = vld [vmem:[%s5] sm:$0xff]
          %v922 = vld [vmem:[%s5 + $0x8] sm:$0xff]
          %v923 = vld [vmem:[%s5 + $0x10] sm:$0xff]
          %v924 = vld [vmem:[%s5 + $0x18] sm:$0xff]
          %v925 = vld [vmem:[%s5 + $0x20] sm:$0xff]
          %v926 = vld [vmem:[%s5 + $0x28] sm:$0xff]
          %v927 = vld [vmem:[%s5 + $0x30] sm:$0xff]
          %v928 = vld [vmem:[%s5 + $0x38] sm:$0xff]
          %v929 = vld [vmem:[%s5 + $0x40] sm:$0xff]
          %v930 = vld [vmem:[%s5 + $0x48] sm:$0xff]
          %v931 = vld [vmem:[%s5 + $0x50] sm:$0xff]
          %v932 = vld [vmem:[%s5 + $0x58] sm:$0xff]
          %v933 = vld [vmem:[%s5 + $0x60] sm:$0xff]
          %v934 = vld [vmem:[%s5 + $0x68] sm:$0xff]
          %v935 = vld [vmem:[%s5 + $0x70] sm:$0xff]
          %v936 = vld [vmem:[%s5 + $0x78] sm:$0xff]
          %v937 = vld [vmem:[%s6] sm:$0x1]
          %938 = vmatprep.subr.mxu0 0.0
          %939 = vmatpush1.msra.mxu0 %v936
          %940 = vmatprep.subr.mxu0 0.0
          %941 = vmatpush1.msra.mxu0 %v935
          %942 = vmatprep.subr.mxu0 0.0
          %943 = vmatpush1.msra.mxu0 %v934
          %944 = vmatprep.subr.mxu0 0.0
          %945 = vmatpush1.msra.mxu0 %v933
          %946 = vmatprep.subr.mxu0 0.0
          %947 = vmatpush1.msra.mxu0 %v932
          %948 = vmatprep.subr.mxu0 0.0
          %949 = vmatpush1.msra.mxu0 %v931
          %950 = vmatprep.subr.mxu0 0.0
          %951 = vmatpush1.msra.mxu0 %v930
          %952 = vmatprep.subr.mxu0 0.0
          %953 = vmatpush1.msra.mxu0 %v929
          %954 = vmatprep.subr.mxu0 0.0
          %955 = vmatpush1.msra.mxu0 %v928
          %956 = vmatprep.subr.mxu0 0.0
          %957 = vmatpush1.msra.mxu0 %v927
          %958 = vmatprep.subr.mxu0 0.0
          %959 = vmatpush1.msra.mxu0 %v926
          %960 = vmatprep.subr.mxu0 0.0
          %961 = vmatpush1.msra.mxu0 %v925
          %962 = vmatprep.subr.mxu0 0.0
          %963 = vmatpush1.msra.mxu0 %v924
          %964 = vmatprep.subr.mxu0 0.0
          %965 = vmatpush1.msra.mxu0 %v923
          %966 = vmatprep.subr.mxu0 0.0
          %967 = vmatpush1.msra.mxu0 %v922
          %968 = vmatprep.subr.mxu0 0.0
          %969 = vmatpush1.msra.mxu0 %v921
          %970 = vmatprep.subr.mxu0 0.0
          %971 = vmatpush2.msra.mxu0 0.0
          %972 = vmatprep.subr.mxu0 0.0
          %973 = vmatpush2.msra.mxu0 0.0
          %974 = vmatprep.subr.mxu0 0.0
          %975 = vmatpush2.msra.mxu0 0.0
          %976 = vmatprep.subr.mxu0 0.0
          %977 = vmatpush2.msra.mxu0 0.0
          %978 = vmatprep.subr.mxu0 0.0
          %979 = vmatpush2.msra.mxu0 0.0
          %980 = vmatprep.subr.mxu0 0.0
          %981 = vmatpush2.msra.mxu0 0.0
          %982 = vmatprep.subr.mxu0 0.0
          %983 = vmatpush2.msra.mxu0 0.0
          %984 = vmatprep.subr.mxu0 0.0
          %985 = vmatpush2.msra.mxu0 0.0
          %986 = vmatprep.subr.mxu0 0.0
          %987 = vmatpush2.msra.mxu0 0.0
          %988 = vmatprep.subr.mxu0 0.0
          %989 = vmatpush2.msra.mxu0 0.0
          %990 = vmatprep.subr.mxu0 0.0
          %991 = vmatpush2.msra.mxu0 0.0
          %992 = vmatprep.subr.mxu0 0.0
          %993 = vmatpush2.msra.mxu0 0.0
          %994 = vmatprep.subr.mxu0 0.0
          %995 = vmatpush2.msra.mxu0 0.0
          %996 = vmatprep.subr.mxu0 0.0
          %997 = vmatpush2.msra.mxu0 0.0
          %998 = vmatprep.subr.mxu0 0.0
          %999 = vmatpush2.msra.mxu0 0.0
          %1000 = vmatprep.subr.mxu0 0.0
          %1001 = vmatpush2.msra.mxu0 0.0
          %1002 = vmatprep.mubr.f32.mxu0 0.0
          %1003 = vmatmul.mubr.f32.gmra.mxu0 %v918
          %v1004 = vpop.f32.mrf.mxu0
          %v1005 = vadd.f32 %v937, %v1004
          %v1006 = vpop.f32.mrf.mxu0
          %1007 = vdwg.mxu0
          %1008 = vst [vmem:[%s295] sm:$0x1] %v1005
        $region56: #{malconv_forward.1} parent=47 // pred_fallthru
          _
        %s1009 = sand.u32 %s195, 1
        %s1010 = scalar_lea.sflag [#allocation4], %s1009
        %s1011 = sand.u32 %s195, 1
        %s1012 = scalar_lea.vmem [#allocation3], %s1011
        // Predicated region
        $region57: #{malconv_forward.1} parent=47 // pred_check
          %p1013 = pneg %p205
        $region58: #{malconv_forward.1} parent=47 // pred_check_branch
          %1015 = sbr.rel (%p1013) target = $region60
        $region59: #{malconv_forward.1} parent=47 // pred_region
          %s1017 = ssub.s32 16, 16
          %1018 = vsyncadd %s1010, %s1017
          %s1019 = smul.addr %s25, 16
          %s1020 = scalar_lea.hbm %s7, %s1019
          %s1022 = sshll.u32 %s1012, 4
          %s1023 = int_to_ptr.vmem [resolvable:$true] %s1022
          %1025 = dma.vmem_to_hbm [thread:$0]  %s1023, 16, %s1020, %s1010
        $region60: #{malconv_forward.1} parent=47 // pred_fallthru
          _
      $region48: #{malconv_forward.1} parent=5 // pred_fallthru
        _
      %p1026 = scmp.le.s32.totalorder 2, %s16
      // Predicated region
      $region61: #{malconv_forward.1} parent=5 // pred_check
        %p1027 = pneg %p1026
      $region62: #{malconv_forward.1} parent=5 // pred_check_branch
        %1029 = sbr.rel (%p1027) target = $region64
      $region63: #{malconv_forward.1} parent=5 // pred_region
        %s1030 = ssub.s32 %s16, 2
        // Predicated region
        $region65: #{malconv_forward.1} parent=63 // pred_check
          %p1031 = pneg %p211
        $region66: #{malconv_forward.1} parent=63 // pred_check_branch
          %1033 = sbr.rel (%p1031) target = $region68
        $region67: #{malconv_forward.1} parent=63 // pred_region
          %s1034 = sand.u32 %s196, 1
          %s1035 = scalar_lea.sflag [#allocation4], %s1034
          %s1036 = sand.u32 %s196, 1
          %s1037 = scalar_lea.vmem [#allocation3], %s1036
          %1038 = dma.done %s1035, 16
        $region68: #{malconv_forward.1} parent=63 // pred_fallthru
          _
      $region64: #{malconv_forward.1} parent=5 // pred_fallthru
        _
    $region6: #{malconv_forward.1} parent=1 // loop_footer
      %s20 = sadd.s32 1, %s16
    $region7: #{malconv_forward.1} parent=1 // loop_footer_branch
      %15 = sbr.rel target = $region3
    $region8: #{malconv_forward.1} parent=1 // loop_exit
      _
    %1039 = vsyncpa [#allocation4], 1
    %s1040 = scalar_lea.sflag [#allocation4], 1
    %1041 = vsyncpa %s1040, 1

</llo_original>
